<compile_context>
chip_gen: v6e
topology: v6e:2x2x1
jax: 0.10.0
libtpu: 0.0.40
codegen_flags: <defaults>
</compile_context>

<pallas_src>
import functools

import numpy as np
import jax
import jax.numpy as jnp
from jax.experimental import pallas as pl
from jax.experimental.pallas import tpu as pltpu

# ----------------------------------------------------------------------------
# Synthetic constants standing in for meloetta's WEATHERS / PSEUDOWEATHERS
# (deterministic, small, consistent with the module's __init__ arithmetic).
# ----------------------------------------------------------------------------
NUM_WEATHERS = 8          # len(WEATHERS)  -> weather one-hot dim = 9
NUM_PSEUDOWEATHERS = 8    # len(PSEUDOWEATHERS)
WEATHER_OH = NUM_WEATHERS + 1   # 9
TIME_OH = 10
MIN_TIME_OH = 7
PW_MIN_OH = 8
PW_MAX_OH = 10
LIN_IN = (WEATHER_OH + TIME_OH + MIN_TIME_OH
          + PW_MAX_OH * NUM_PSEUDOWEATHERS
          + PW_MIN_OH * NUM_PSEUDOWEATHERS)   # 9+10+7+80+64 = 170
EMBED_DIM = 32            # config.embedding_dim

HALF = 128                # sublane half of the packed feature space
F_PAD = 2 * HALF          # 256 padded feature width (padding cols are zero)
N_IDX = 3 + 2 * NUM_PSEUDOWEATHERS    # 19 one-hot indices per row
N_IDX_H0 = NUM_PSEUDOWEATHERS + 6     # 14 indices land in half 0
N_IDX_H1 = N_IDX - N_IDX_H0           # 5 indices land in half 1

# Packed feature layout (no one-hot segment straddles the 128 boundary):
#   half 0: pw_max_j  -> [10*j, 10*j+10)           j = 0..7   (80 cols)
#           pw_min_j  -> [80 + 8*j, 80 + 8*j + 8)  j = 0..5   (48 cols) -> 128
#   half 1: pw_min_j  -> [128 + 8*(j-6), ...)      j = 6..7   (16 cols)
#           weather   -> [144, 153)
#           time_left -> [153, 163)
#           min_time  -> [163, 170)      ; 170..255 = zero padding
PK_PW_MAX = 0
PK_PW_MIN_LO = 80
PK_PW_MIN_HI = 128
PK_WEATHER = 144
PK_TIME = 153
PK_MIN_TIME = 163


def _pack_permutation():
    """Map original cat-order W1 row index -> packed feature index."""
    perm = np.zeros((LIN_IN,), dtype=np.int32)
    o = 0
    for i in range(WEATHER_OH):
        perm[o + i] = PK_WEATHER + i
    o += WEATHER_OH
    for i in range(TIME_OH):
        perm[o + i] = PK_TIME + i
    o += TIME_OH
    for i in range(MIN_TIME_OH):
        perm[o + i] = PK_MIN_TIME + i
    o += MIN_TIME_OH
    for j in range(NUM_PSEUDOWEATHERS):
        for k in range(PW_MAX_OH):
            perm[o + PW_MAX_OH * j + k] = PK_PW_MAX + PW_MAX_OH * j + k
    o += PW_MAX_OH * NUM_PSEUDOWEATHERS
    for j in range(NUM_PSEUDOWEATHERS):
        for k in range(PW_MIN_OH):
            if j < 6:
                perm[o + PW_MIN_OH * j + k] = PK_PW_MIN_LO + PW_MIN_OH * j + k
            else:
                perm[o + PW_MIN_OH * j + k] = (PK_PW_MIN_HI
                                               + PW_MIN_OH * (j - 6) + k)
    return perm


_PACK_PERM = _pack_permutation()


# ----------------------------------------------------------------------------
# Pallas kernel: in-kernel one-hot (two 128-feature halves) -> Linear -> ReLU
# -> Linear, all in the transposed (feature-major / step-on-lanes) layout.
# ----------------------------------------------------------------------------
def _fused_kernel(idx_ref, w1t_ref, b1_ref, w2t_ref, b2_ref, o_ref, *,
                  bf16_compares):
    tile_n = o_ref.shape[1]

    # Single 0..127 iota over the sublane (feature) axis; the wrapper ships
    # half-local indices so the same iota serves both halves.
    iota = jax.lax.broadcasted_iota(jnp.int32, (HALF, tile_n), 0)
    idx = idx_ref[...]                                    # (N_IDX, tile_n) i32
    if bf16_compares:                                     # v6e / v7x bf16 VALU
        iota = iota.astype(jnp.bfloat16)
        idx = idx.astype(jnp.bfloat16)

    one = jnp.ones((), jnp.bfloat16)
    zero = jnp.zeros((), jnp.bfloat16)

    def onehot_half(cols):
        # OR of equality masks; segments are disjoint so this is an exact
        # one-hot.  Emit bf16 directly (no f32 slab + cast pass).
        hit = iota == idx[cols[0]:cols[0] + 1, :]
        for c in cols[1:]:
            hit = jnp.logical_or(hit, iota == idx[c:c + 1, :])
        return jnp.where(hit, one, zero)                  # (HALF, tile_n) bf16

    x0 = onehot_half(list(range(0, N_IDX_H0)))            # pw_max + pw_min[0:6]
    x1 = onehot_half(list(range(N_IDX_H0, N_IDX)))        # pw_min[6:8]+w/t/mt

    h = jnp.dot(w1t_ref[:, 0:HALF], x0, preferred_element_type=jnp.float32)
    h = h + jnp.dot(w1t_ref[:, HALF:F_PAD], x1,
                    preferred_element_type=jnp.float32)   # (D, tile_n) f32
    h = jnp.maximum(h + b1_ref[...], 0.0).astype(jnp.bfloat16)
    o = jnp.dot(w2t_ref[...], h, preferred_element_type=jnp.float32)
    o_ref[...] = (o + b2_ref[...]).astype(o_ref.dtype)


def _choose_tile_n(n):
    """Lane tile: multiple of 128, minimal padding, >=2 steps for large N
    (v7x megacore), capped at 2048 rows/step."""
    chunks = -(-n // 128)                 # 128-lane chunks needed
    if chunks <= 8:                       # n <= 1024: a single grid step
        return max(chunks, 1) * 128
    steps = max(2, -(-chunks // 16))      # >=2 steps, tile <= 2048
    return -(-chunks // steps) * 128


def _has_bf16_valu():
    """bf16 compares on v6e/v7x; int32 path on v5e and older (no bf16 VALU)."""
    try:
        kind = jax.devices()[0].device_kind.lower()
    except Exception:
        return True
    return not any(g in kind for g in ("v2", "v3", "v4", "v5"))


def fused_mlp_pallas(idx_t, w1t, b1, w2t, b2, *, out_dtype=jnp.float32,
                     bf16_compares=None):
    """idx_t: (N_IDX, N) int32 half-local packed indices.
       w1t: bf16 (D, F_PAD) packed+transposed; b1: f32 (D, 1);
       w2t: bf16 (D, D) transposed; b2: f32 (D, 1).
       Returns (D, N) in out_dtype."""
    if bf16_compares is None:
        bf16_compares = _has_bf16_valu()
    n_idx, n = idx_t.shape
    d = w1t.shape[0]

    tile_n = _choose_tile_n(n)
    n_pad = -(-n // tile_n) * tile_n
    if n_pad != n:
        idx_t = jnp.pad(idx_t, ((0, 0), (0, n_pad - n)))
    grid = (n_pad // tile_n,)

    out_bytes = jnp.dtype(out_dtype).itemsize
    cost = pl.CostEstimate(
        flops=2 * n_pad * (F_PAD * d + d * d),
        transcendentals=0,
        bytes_accessed=(n_idx * n_pad * 4               # indices
                        + w1t.size * 2 + w2t.size * 2   # bf16 weights
                        + b1.size * 4 + b2.size * 4     # f32 biases
                        + n_pad * d * out_bytes))       # output

    kernel = functools.partial(_fused_kernel, bf16_compares=bf16_compares)
    out = pl.pallas_call(
        kernel,
        out_shape=jax.ShapeDtypeStruct((d, n_pad), out_dtype),
        grid_spec=pltpu.PrefetchScalarGridSpec(
            num_scalar_prefetch=0,
            grid=grid,
            in_specs=[
                pl.BlockSpec((n_idx, tile_n), lambda i: (0, i)),   # indices
                pl.BlockSpec((d, F_PAD), lambda i: (0, 0)),        # W1^T resident
                pl.BlockSpec((d, 1), lambda i: (0, 0)),            # b1
                pl.BlockSpec((d, d), lambda i: (0, 0)),            # W2^T
                pl.BlockSpec((d, 1), lambda i: (0, 0)),            # b2
            ],
            out_specs=pl.BlockSpec((d, tile_n), lambda i: (0, i)),
        ),
        compiler_params=pltpu.CompilerParams(
            dimension_semantics=("parallel",)),
        cost_estimate=cost,
    )(idx_t, w1t, b1, w2t, b2)
    return out[:, :n]


# ----------------------------------------------------------------------------
# WeatherEncoder forward: integer index packing in JAX, fused MLP in Pallas.
# ----------------------------------------------------------------------------
def _pack_indices(weather, time_left, min_time_left, pseudo_weather):
    """(T, B) inputs -> (T, B, N_IDX) half-local packed one-hot indices.
    Indices are clamped into their segments (torch would raise on OOB;
    clamping keeps the disjoint-segment invariant the OR-one-hot needs)."""
    weather = jnp.clip(weather, -1, NUM_WEATHERS - 1)
    time_left = jnp.clip(time_left, 0, TIME_OH - 1)
    min_time_left = jnp.clip(min_time_left, 0, MIN_TIME_OH - 1)
    pw = pseudo_weather + 1
    pw_min = jnp.clip(pw[..., 0], 0, PW_MIN_OH - 1)       # (T, B, NPW)
    pw_max = jnp.clip(pw[..., 1], 0, PW_MAX_OH - 1)       # (T, B, NPW)
    j = jnp.arange(NUM_PSEUDOWEATHERS, dtype=jnp.int32)

    idx = jnp.concatenate(
        [pw_max + PW_MAX_OH * j + PK_PW_MAX,                             # 8, half 0
         pw_min[..., :6] + PW_MIN_OH * j[:6] + PK_PW_MIN_LO,             # 6, half 0
         pw_min[..., 6:] + PW_MIN_OH * (j[6:] - 6) + (PK_PW_MIN_HI - HALF),  # 2, half 1
         (weather + 1 + (PK_WEATHER - HALF))[..., None],                 # 1, half 1
         (time_left + (PK_TIME - HALF))[..., None],                      # 1, half 1
         (min_time_left + (PK_MIN_TIME - HALF))[..., None]],             # 1, half 1
        axis=-1).astype(jnp.int32)                                       # (T, B, 19)
    return idx


def weather_encoder_forward(params, weather, time_left, min_time_left,
                            pseudo_weather, *, out_dtype=jnp.float32):
    """
    weather:        int32 (T, B)          values in [-1, NUM_WEATHERS-1]
    time_left:      int32 (T, B)          values in [0, 9]
    min_time_left:  int32 (T, B)          values in [0, 6]
    pseudo_weather: int32 (T, B, NPW, 2)  values in [-1, ...]
    returns:        (T, B, EMBED_DIM) in out_dtype (default f32)
    """
    # TODO(synk): at the module's typical call shape (T=2, B=8 -> 16 rows) a
    # pallas_call is pure launch overhead; batch steps / fuse sibling encoders
    # into one kernel upstream rather than tuning this kernel further there.
    T, B = weather.shape
    idx = _pack_indices(weather, time_left, min_time_left, pseudo_weather)
    idx_t = idx.reshape(T * B, N_IDX).T                   # (19, N), rows on lanes
    out_t = fused_mlp_pallas(idx_t, params["w1t"], params["b1c"],
                             params["w2t"], params["b2c"], out_dtype=out_dtype)
    return out_t.T.reshape(T, B, EMBED_DIM)


def init_params(key):
    """nn.Linear-style init.  Stores the original cat-order f32 weights (for
    the reference) and the packed / transposed bf16 kernel weights."""
    k1, k2, k3, k4 = jax.random.split(key, 4)
    bound1 = 1.0 / np.sqrt(LIN_IN)
    bound2 = 1.0 / np.sqrt(EMBED_DIM)
    w1 = jax.random.uniform(k1, (LIN_IN, EMBED_DIM), jnp.float32, -bound1, bound1)
    b1 = jax.random.uniform(k2, (EMBED_DIM,), jnp.float32, -bound1, bound1)
    w2 = jax.random.uniform(k3, (EMBED_DIM, EMBED_DIM), jnp.float32, -bound2, bound2)
    b2 = jax.random.uniform(k4, (EMBED_DIM,), jnp.float32, -bound2, bound2)

    perm = jnp.asarray(_PACK_PERM)
    w1_packed = jnp.zeros((F_PAD, EMBED_DIM), jnp.float32).at[perm].set(w1)
    return {
        # original cat-order parameters (reference / interop)
        "w1": w1, "b1": b1, "w2": w2, "b2": b2,
        # kernel parameters: packed feature layout, transposed, bf16 weights
        "w1t": w1_packed.T.astype(jnp.bfloat16),          # (D, F_PAD)
        "b1c": b1.reshape(EMBED_DIM, 1),                  # (D, 1) f32
        "w2t": w2.T.astype(jnp.bfloat16),                 # (D, D)
        "b2c": b2.reshape(EMBED_DIM, 1),                  # (D, 1) f32
    }


def _reference_forward(params, weather, time_left, min_time_left,
                       pseudo_weather):
    """Pure-JAX reference with the module's original cat layout.  Uses the
    bf16-rounded weights so the check isolates packing/layout errors."""
    T, B = weather.shape
    weather_oh = jax.nn.one_hot(weather + 1, WEATHER_OH, dtype=jnp.float32)
    time_oh = jax.nn.one_hot(time_left, TIME_OH, dtype=jnp.float32)
    min_time_oh = jax.nn.one_hot(min_time_left, MIN_TIME_OH, dtype=jnp.float32)
    pw = pseudo_weather + 1
    pw_min_oh = jax.nn.one_hot(pw[..., 0], PW_MIN_OH,
                               dtype=jnp.float32).reshape(T, B, -1)
    pw_max_oh = jax.nn.one_hot(pw[..., 1], PW_MAX_OH,
                               dtype=jnp.float32).reshape(T, B, -1)
    feats = jnp.concatenate(
        [weather_oh, time_oh, min_time_oh, pw_max_oh, pw_min_oh], axis=-1)
    w1 = params["w1"].astype(jnp.bfloat16).astype(jnp.float32)
    w2 = params["w2"].astype(jnp.bfloat16).astype(jnp.float32)
    h = jnp.maximum(feats @ w1 + params["b1"], 0.0)
    return h @ w2 + params["b2"]


def _make_inputs(key, T, B):
    kw, kt, km, kp1, kp2 = jax.random.split(key, 5)
    weather = jax.random.randint(kw, (T, B), -1, NUM_WEATHERS, dtype=jnp.int32)
    time_left = jax.random.randint(kt, (T, B), 0, TIME_OH, dtype=jnp.int32)
    min_time_left = jax.random.randint(km, (T, B), 0, MIN_TIME_OH,
                                       dtype=jnp.int32)
    # [..., 0] + 1 in [0, PW_MIN_OH), [..., 1] + 1 in [0, PW_MAX_OH)
    pw_min = jax.random.randint(kp1, (T, B, NUM_PSEUDOWEATHERS, 1), -1,
                                PW_MIN_OH - 1, dtype=jnp.int32)
    pw_max = jax.random.randint(kp2, (T, B, NUM_PSEUDOWEATHERS, 1), -1,
                                PW_MAX_OH - 1, dtype=jnp.int32)
    pseudo_weather = jnp.concatenate([pw_min, pw_max], axis=-1)
    return weather, time_left, min_time_left, pseudo_weather


if __name__ == "__main__":
    key = jax.random.PRNGKey(0)
    kp, k_small, k_big = jax.random.split(key, 3)
    params = init_params(kp)

    # Small case matching the module's typical call shape (single grid step).
    T, B = 2, 8
    w, t, m, pw = _make_inputs(k_small, T, B)
    out = jax.block_until_ready(weather_encoder_forward(params, w, t, m, pw))
    ref = _reference_forward(params, w, t, m, pw)
    assert out.shape == (T, B, EMBED_DIM)
    assert out.dtype == jnp.float32
    assert jnp.allclose(out, ref, atol=2e-2, rtol=2e-2)

    # Larger case: N = 1280 -> 2 grid steps of tile_n = 640 (zero padding).
    T2, B2 = 16, 80
    w2, t2, m2, pw2 = _make_inputs(k_big, T2, B2)
    out2 = jax.block_until_ready(weather_encoder_forward(params, w2, t2, m2, pw2))
    ref2 = _reference_forward(params, w2, t2, m2, pw2)
    assert out2.shape == (T2, B2, EMBED_DIM)
    assert jnp.allclose(out2, ref2, atol=2e-2, rtol=2e-2)

    print("KERNEL_OK")
</pallas_src>

<mosaic_0001>
module attributes {stable_mosaic.version = 11 : i64} {
  func.func @_fused_kernel(%arg0: i32, %arg1: memref<19x128xi32, #tpu.memory_space<vmem>>, %arg2: memref<32x256xbf16, #tpu.memory_space<vmem>>, %arg3: memref<32x1xf32, #tpu.memory_space<vmem>>, %arg4: memref<32x32xbf16, #tpu.memory_space<vmem>>, %arg5: memref<32x1xf32, #tpu.memory_space<vmem>>, %arg6: memref<32x128xf32, #tpu.memory_space<vmem>>) attributes {dimension_semantics = [#tpu.dimension_semantics<parallel>], iteration_bounds = array<i64: 1>, scalar_prefetch = 0 : i64, scratch_operands = 0 : i64, tpu.core_type = #tpu.core_type<tc>, window_params = [{transform_indices = @transform_0, window_bounds = array<i64: 19, 128>}, {pipeline_mode = #tpu.pipeline_mode<synchronous>, transform_indices = @transform_1, window_bounds = array<i64: 32, 256>}, {pipeline_mode = #tpu.pipeline_mode<synchronous>, transform_indices = @transform_2, window_bounds = array<i64: 32, 1>}, {pipeline_mode = #tpu.pipeline_mode<synchronous>, transform_indices = @transform_3, window_bounds = array<i64: 32, 32>}, {pipeline_mode = #tpu.pipeline_mode<synchronous>, transform_indices = @transform_4, window_bounds = array<i64: 32, 1>}, {transform_indices = @transform_5, window_bounds = array<i64: 32, 128>}]} {
    %0 = tpu.iota {dimensions = array<i32: 0>} : vector<128x128xi32>
    %c0 = arith.constant 0 : index
    %c0_0 = arith.constant 0 : index
    %1 = vector.load %arg1[%c0, %c0_0] : memref<19x128xi32, #tpu.memory_space<vmem>>, vector<19x128xi32>
    %2 = arith.sitofp %0 : vector<128x128xi32> to vector<128x128xbf16>
    %3 = arith.sitofp %1 : vector<19x128xi32> to vector<19x128xbf16>
    %4 = vector.extract_strided_slice %3 {offsets = [0, 0], sizes = [1, 128], strides = [1, 1]} : vector<19x128xbf16> to vector<1x128xbf16>
    %5 = vector.broadcast %4 : vector<1x128xbf16> to vector<128x128xbf16>
    %6 = arith.cmpf oeq, %2, %5 : vector<128x128xbf16>
    %7 = vector.extract_strided_slice %3 {offsets = [1, 0], sizes = [1, 128], strides = [1, 1]} : vector<19x128xbf16> to vector<1x128xbf16>
    %8 = vector.broadcast %7 : vector<1x128xbf16> to vector<128x128xbf16>
    %9 = arith.cmpf oeq, %2, %8 : vector<128x128xbf16>
    %10 = arith.ori %6, %9 : vector<128x128xi1>
    %11 = vector.extract_strided_slice %3 {offsets = [2, 0], sizes = [1, 128], strides = [1, 1]} : vector<19x128xbf16> to vector<1x128xbf16>
    %12 = vector.broadcast %11 : vector<1x128xbf16> to vector<128x128xbf16>
    %13 = arith.cmpf oeq, %2, %12 : vector<128x128xbf16>
    %14 = arith.ori %10, %13 : vector<128x128xi1>
    %15 = vector.extract_strided_slice %3 {offsets = [3, 0], sizes = [1, 128], strides = [1, 1]} : vector<19x128xbf16> to vector<1x128xbf16>
    %16 = vector.broadcast %15 : vector<1x128xbf16> to vector<128x128xbf16>
    %17 = arith.cmpf oeq, %2, %16 : vector<128x128xbf16>
    %18 = arith.ori %14, %17 : vector<128x128xi1>
    %19 = vector.extract_strided_slice %3 {offsets = [4, 0], sizes = [1, 128], strides = [1, 1]} : vector<19x128xbf16> to vector<1x128xbf16>
    %20 = vector.broadcast %19 : vector<1x128xbf16> to vector<128x128xbf16>
    %21 = arith.cmpf oeq, %2, %20 : vector<128x128xbf16>
    %22 = arith.ori %18, %21 : vector<128x128xi1>
    %23 = vector.extract_strided_slice %3 {offsets = [5, 0], sizes = [1, 128], strides = [1, 1]} : vector<19x128xbf16> to vector<1x128xbf16>
    %24 = vector.broadcast %23 : vector<1x128xbf16> to vector<128x128xbf16>
    %25 = arith.cmpf oeq, %2, %24 : vector<128x128xbf16>
    %26 = arith.ori %22, %25 : vector<128x128xi1>
    %27 = vector.extract_strided_slice %3 {offsets = [6, 0], sizes = [1, 128], strides = [1, 1]} : vector<19x128xbf16> to vector<1x128xbf16>
    %28 = vector.broadcast %27 : vector<1x128xbf16> to vector<128x128xbf16>
    %29 = arith.cmpf oeq, %2, %28 : vector<128x128xbf16>
    %30 = arith.ori %26, %29 : vector<128x128xi1>
    %31 = vector.extract_strided_slice %3 {offsets = [7, 0], sizes = [1, 128], strides = [1, 1]} : vector<19x128xbf16> to vector<1x128xbf16>
    %32 = vector.broadcast %31 : vector<1x128xbf16> to vector<128x128xbf16>
    %33 = arith.cmpf oeq, %2, %32 : vector<128x128xbf16>
    %34 = arith.ori %30, %33 : vector<128x128xi1>
    %35 = vector.extract_strided_slice %3 {offsets = [8, 0], sizes = [1, 128], strides = [1, 1]} : vector<19x128xbf16> to vector<1x128xbf16>
    %36 = vector.broadcast %35 : vector<1x128xbf16> to vector<128x128xbf16>
    %37 = arith.cmpf oeq, %2, %36 : vector<128x128xbf16>
    %38 = arith.ori %34, %37 : vector<128x128xi1>
    %39 = vector.extract_strided_slice %3 {offsets = [9, 0], sizes = [1, 128], strides = [1, 1]} : vector<19x128xbf16> to vector<1x128xbf16>
    %40 = vector.broadcast %39 : vector<1x128xbf16> to vector<128x128xbf16>
    %41 = arith.cmpf oeq, %2, %40 : vector<128x128xbf16>
    %42 = arith.ori %38, %41 : vector<128x128xi1>
    %43 = vector.extract_strided_slice %3 {offsets = [10, 0], sizes = [1, 128], strides = [1, 1]} : vector<19x128xbf16> to vector<1x128xbf16>
    %44 = vector.broadcast %43 : vector<1x128xbf16> to vector<128x128xbf16>
    %45 = arith.cmpf oeq, %2, %44 : vector<128x128xbf16>
    %46 = arith.ori %42, %45 : vector<128x128xi1>
    %47 = vector.extract_strided_slice %3 {offsets = [11, 0], sizes = [1, 128], strides = [1, 1]} : vector<19x128xbf16> to vector<1x128xbf16>
    %48 = vector.broadcast %47 : vector<1x128xbf16> to vector<128x128xbf16>
    %49 = arith.cmpf oeq, %2, %48 : vector<128x128xbf16>
    %50 = arith.ori %46, %49 : vector<128x128xi1>
    %51 = vector.extract_strided_slice %3 {offsets = [12, 0], sizes = [1, 128], strides = [1, 1]} : vector<19x128xbf16> to vector<1x128xbf16>
    %52 = vector.broadcast %51 : vector<1x128xbf16> to vector<128x128xbf16>
    %53 = arith.cmpf oeq, %2, %52 : vector<128x128xbf16>
    %54 = arith.ori %50, %53 : vector<128x128xi1>
    %55 = vector.extract_strided_slice %3 {offsets = [13, 0], sizes = [1, 128], strides = [1, 1]} : vector<19x128xbf16> to vector<1x128xbf16>
    %56 = vector.broadcast %55 : vector<1x128xbf16> to vector<128x128xbf16>
    %57 = arith.cmpf oeq, %2, %56 : vector<128x128xbf16>
    %58 = arith.ori %54, %57 : vector<128x128xi1>
    %cst = arith.constant 1.000000e+00 : bf16
    %cst_1 = arith.constant 0.000000e+00 : bf16
    %59 = vector.broadcast %cst : bf16 to vector<128x128xbf16>
    %60 = vector.broadcast %cst_1 : bf16 to vector<128x128xbf16>
    %61 = arith.select %58, %59, %60 : vector<128x128xi1>, vector<128x128xbf16>
    %62 = vector.extract_strided_slice %3 {offsets = [14, 0], sizes = [1, 128], strides = [1, 1]} : vector<19x128xbf16> to vector<1x128xbf16>
    %63 = vector.broadcast %62 : vector<1x128xbf16> to vector<128x128xbf16>
    %64 = arith.cmpf oeq, %2, %63 : vector<128x128xbf16>
    %65 = vector.extract_strided_slice %3 {offsets = [15, 0], sizes = [1, 128], strides = [1, 1]} : vector<19x128xbf16> to vector<1x128xbf16>
    %66 = vector.broadcast %65 : vector<1x128xbf16> to vector<128x128xbf16>
    %67 = arith.cmpf oeq, %2, %66 : vector<128x128xbf16>
    %68 = arith.ori %64, %67 : vector<128x128xi1>
    %69 = vector.extract_strided_slice %3 {offsets = [16, 0], sizes = [1, 128], strides = [1, 1]} : vector<19x128xbf16> to vector<1x128xbf16>
    %70 = vector.broadcast %69 : vector<1x128xbf16> to vector<128x128xbf16>
    %71 = arith.cmpf oeq, %2, %70 : vector<128x128xbf16>
    %72 = arith.ori %68, %71 : vector<128x128xi1>
    %73 = vector.extract_strided_slice %3 {offsets = [17, 0], sizes = [1, 128], strides = [1, 1]} : vector<19x128xbf16> to vector<1x128xbf16>
    %74 = vector.broadcast %73 : vector<1x128xbf16> to vector<128x128xbf16>
    %75 = arith.cmpf oeq, %2, %74 : vector<128x128xbf16>
    %76 = arith.ori %72, %75 : vector<128x128xi1>
    %77 = vector.extract_strided_slice %3 {offsets = [18, 0], sizes = [1, 128], strides = [1, 1]} : vector<19x128xbf16> to vector<1x128xbf16>
    %78 = vector.broadcast %77 : vector<1x128xbf16> to vector<128x128xbf16>
    %79 = arith.cmpf oeq, %2, %78 : vector<128x128xbf16>
    %80 = arith.ori %76, %79 : vector<128x128xi1>
    %cst_2 = arith.constant 1.000000e+00 : bf16
    %cst_3 = arith.constant 0.000000e+00 : bf16
    %81 = vector.broadcast %cst_2 : bf16 to vector<128x128xbf16>
    %82 = vector.broadcast %cst_3 : bf16 to vector<128x128xbf16>
    %83 = arith.select %80, %81, %82 : vector<128x128xi1>, vector<128x128xbf16>
    %c0_4 = arith.constant 0 : index
    %c0_5 = arith.constant 0 : index
    %84 = vector.load %arg2[%c0_4, %c0_5] : memref<32x256xbf16, #tpu.memory_space<vmem>>, vector<32x128xbf16>
    %cst_6 = arith.constant dense<0.000000e+00> : vector<32x128xf32>
    %85 = tpu.matmul %84, %61, %cst_6 {dimension_numbers = #tpu.dot_dimension_numbers<[1], [0], [0], [1], [0, 0, 1, 1], [], []>} : vector<32x128xbf16>, vector<128x128xbf16>, vector<32x128xf32> -> vector<32x128xf32>
    %c0_7 = arith.constant 0 : index
    %c128 = arith.constant 128 : index
    %86 = vector.load %arg2[%c0_7, %c128] : memref<32x256xbf16, #tpu.memory_space<vmem>>, vector<32x128xbf16>
    %cst_8 = arith.constant dense<0.000000e+00> : vector<32x128xf32>
    %87 = tpu.matmul %86, %83, %cst_8 {dimension_numbers = #tpu.dot_dimension_numbers<[1], [0], [0], [1], [0, 0, 1, 1], [], []>} : vector<32x128xbf16>, vector<128x128xbf16>, vector<32x128xf32> -> vector<32x128xf32>
    %88 = arith.addf %85, %87 : vector<32x128xf32>
    %c0_9 = arith.constant 0 : index
    %c0_10 = arith.constant 0 : index
    %89 = vector.load %arg3[%c0_9, %c0_10] : memref<32x1xf32, #tpu.memory_space<vmem>>, vector<32x1xf32>
    %90 = vector.broadcast %89 : vector<32x1xf32> to vector<32x128xf32>
    %91 = arith.addf %88, %90 : vector<32x128xf32>
    %cst_11 = arith.constant 0.000000e+00 : f32
    %92 = vector.broadcast %cst_11 : f32 to vector<32x128xf32>
    %93 = arith.maximumf %91, %92 : vector<32x128xf32>
    %94 = arith.truncf %93 : vector<32x128xf32> to vector<32x128xbf16>
    %c0_12 = arith.constant 0 : index
    %c0_13 = arith.constant 0 : index
    %95 = vector.load %arg4[%c0_12, %c0_13] : memref<32x32xbf16, #tpu.memory_space<vmem>>, vector<32x32xbf16>
    %cst_14 = arith.constant dense<0.000000e+00> : vector<32x128xf32>
    %96 = tpu.matmul %95, %94, %cst_14 {dimension_numbers = #tpu.dot_dimension_numbers<[1], [0], [0], [1], [0, 0, 1, 1], [], []>} : vector<32x32xbf16>, vector<32x128xbf16>, vector<32x128xf32> -> vector<32x128xf32>
    %c0_15 = arith.constant 0 : index
    %c0_16 = arith.constant 0 : index
    %97 = vector.load %arg5[%c0_15, %c0_16] : memref<32x1xf32, #tpu.memory_space<vmem>>, vector<32x1xf32>
    %98 = vector.broadcast %97 : vector<32x1xf32> to vector<32x128xf32>
    %99 = arith.addf %96, %98 : vector<32x128xf32>
    %c0_17 = arith.constant 0 : index
    %c0_18 = arith.constant 0 : index
    %100 = vector.load %arg6[%c0_17, %c0_18] : memref<32x128xf32, #tpu.memory_space<vmem>>, vector<32x128xf32>
    tpu.vector_store %arg6[%c0_17, %c0_18], %99 {strides = array<i32>} : memref<32x128xf32, #tpu.memory_space<vmem>>, vector<32x128xf32>,
    return
  }
  func.func @transform_0(%arg0: i32) -> (i32, i32) {
    %c0_i32 = arith.constant 0 : i32
    %c0_i32_0 = arith.constant 0 : i32
    return %c0_i32, %arg0 : i32, i32
  }
  func.func @transform_1(%arg0: i32) -> (i32, i32) {
    %c0_i32 = arith.constant 0 : i32
    %c0_i32_0 = arith.constant 0 : i32
    %c0_i32_1 = arith.constant 0 : i32
    return %c0_i32, %c0_i32_0 : i32, i32
  }
  func.func @transform_2(%arg0: i32) -> (i32, i32) {
    %c0_i32 = arith.constant 0 : i32
    %c0_i32_0 = arith.constant 0 : i32
    %c0_i32_1 = arith.constant 0 : i32
    return %c0_i32, %c0_i32_0 : i32, i32
  }
  func.func @transform_3(%arg0: i32) -> (i32, i32) {
    %c0_i32 = arith.constant 0 : i32
    %c0_i32_0 = arith.constant 0 : i32
    %c0_i32_1 = arith.constant 0 : i32
    return %c0_i32, %c0_i32_0 : i32, i32
  }
  func.func @transform_4(%arg0: i32) -> (i32, i32) {
    %c0_i32 = arith.constant 0 : i32
    %c0_i32_0 = arith.constant 0 : i32
    %c0_i32_1 = arith.constant 0 : i32
    return %c0_i32, %c0_i32_0 : i32, i32
  }
  func.func @transform_5(%arg0: i32) -> (i32, i32) {
    %c0_i32 = arith.constant 0 : i32
    %c0_i32_0 = arith.constant 0 : i32
    return %c0_i32, %arg0 : i32, i32
  }
}

</mosaic_0001>

<llo_original>
// kernel: tpu_custom_call.1
$region0: #{tpu_custom_call.1}
  #allocation0 [shape = 'u32[]', space=smem, size = 0x4, offset = 0x4, fixed_abs, tag = 'smem constant byte address 0x4 - core index']
  #allocation1 [shape = 'u32[144,128]{1,0:T(1,128)}', space=vmem, size = 0x12000, scoped, tag = 'internal scratch']
  %s0 = inlined_call_operand.vmem [shape: s32[19,128], index: 0, kind: input, shape index: {}]
  %s1 = inlined_call_operand.vmem [shape: bf16[32,256], index: 1, kind: input, shape index: {}]
  %s2 = inlined_call_operand.vmem [shape: f32[32,1], index: 2, kind: input, shape index: {}]
  %s3 = inlined_call_operand.hbm [shape: bf16[32,32], index: 3, kind: input, shape index: {}]
  %s4 = inlined_call_operand.vmem [shape: f32[32,1], index: 4, kind: input, shape index: {}]
  %s5 = inlined_call_operand.hbm [shape: f32[32,128], index: 5, kind: output, shape index: {}]
  %s6 = sld [smem:[#allocation0]]
  $region34: #{tpu_custom_call.1} parent=0
    _
  %s8 = ssub.s32 1, %s6
  %s9 = scalar_select 0, %s8, %s6
  $region1: #{tpu_custom_call.1} parent=0
    #allocation2 [shape = 'u8[8192]{0}', space=vmem, size = 0x2000, scoped, tag = 'input window, operand 3, single buffered']
    #allocation3 [shape = 's32[1]{0}', space=sflag, size = 0x4, scoped, tag = 'scoped memory for tpu_custom_call.1']
    #allocation4 [shape = 's32[1]{0}', space=sflag, size = 0x4, scoped, tag = 'scoped memory for tpu_custom_call.1']
    #allocation5 [shape = 'u8[16384]{0}', space=vmem, size = 0x4000, scoped, tag = 'output window, operand 0, single buffered']
    %10 = vsyncpa [#allocation3], 0
    %11 = vsyncpa [#allocation4], 0
    // Predicated region
    $region2: #{tpu_custom_call.1} parent=1 // pred_check
      _
    $region3: #{tpu_custom_call.1} parent=1 // pred_check_branch
      %13 = sbr.rel (0) target = $region5
    $region4: #{tpu_custom_call.1} parent=1 // pred_region
      _
    $region5: #{tpu_custom_call.1} parent=1 // pred_fallthru
      _
    // Predicated region
    $region6: #{tpu_custom_call.1} parent=1 // pred_check
      _
    $region7: #{tpu_custom_call.1} parent=1 // pred_check_branch
      %15 = sbr.rel (0) target = $region9
    $region8: #{tpu_custom_call.1} parent=1 // pred_region
      _
    $region9: #{tpu_custom_call.1} parent=1 // pred_fallthru
      _
    // Predicated region
    $region10: #{tpu_custom_call.1} parent=1 // pred_check
      _
    $region11: #{tpu_custom_call.1} parent=1 // pred_check_branch
      %17 = sbr.rel (0) target = $region13
    $region12: #{tpu_custom_call.1} parent=1 // pred_region
      _
    $region13: #{tpu_custom_call.1} parent=1 // pred_fallthru
      _
    // Predicated region
    $region14: #{tpu_custom_call.1} parent=1 // pred_check
      _
    $region15: #{tpu_custom_call.1} parent=1 // pred_check_branch
      %19 = sbr.rel (0) target = $region17
    $region16: #{tpu_custom_call.1} parent=1 // pred_region
      %s21 = ssub.s32 256, 256
      %22 = vsyncadd [#allocation3], %s21
      %s23 = sshll.u32 [#allocation2], 4
      %s24 = int_to_ptr.vmem [resolvable:$true] %s23
      %29 = dma.hbm_to_vmem [thread:$0]  %s3, 256, %s24, [#allocation3], 64, 64, 4
    $region17: #{tpu_custom_call.1} parent=1 // pred_fallthru
      _
    // Predicated region
    $region18: #{tpu_custom_call.1} parent=1 // pred_check
      _
    $region19: #{tpu_custom_call.1} parent=1 // pred_check_branch
      %31 = sbr.rel (0) target = $region21
    $region20: #{tpu_custom_call.1} parent=1 // pred_region
      _
    $region21: #{tpu_custom_call.1} parent=1 // pred_fallthru
      _
    // Predicated region
    $region22: #{tpu_custom_call.1} parent=1 // pred_check
      _
    $region23: #{tpu_custom_call.1} parent=1 // pred_check_branch
      %33 = sbr.rel (0) target = $region25
    $region24: #{tpu_custom_call.1} parent=1 // pred_region
      %34 = dma.done [#allocation3], 256
    $region25: #{tpu_custom_call.1} parent=1 // pred_fallthru
      _
    %v37 = vlaneseq
    %v38 = vshrl.u32 %v37, 7
    %v39 = vadd.s32 %v38, 8
    %v40 = vadd.s32 %v38, 16
    %v41 = vadd.s32 %v38, 24
    %v42 = vadd.s32 %v38, 32
    %v43 = vadd.s32 %v38, 40
    %v44 = vadd.s32 %v38, 48
    %v45 = vadd.s32 %v38, 56
    %v46 = vadd.s32 %v38, 64
    %v47 = vadd.s32 %v38, 72
    %v48 = vadd.s32 %v38, 80
    %v49 = vadd.s32 %v38, 88
    %v50 = vadd.s32 %v38, 96
    %v51 = vadd.s32 %v38, 104
    %v52 = vadd.s32 %v38, 112
    %v53 = vadd.s32 %v38, 120
    %v54 = vld [vmem:[%s0] sm:$0xff]
    %v55 = vld [vmem:[%s0 + $0x8] sm:$0xff]
    %v56 = vld [vmem:[%s0 + $0x10] sm:$0x7]
    %v57 = vcvt.s32.f32 %v38
    %v58 = vcvt.s32.f32 %v39
    %v59 = vcvt.s32.f32 %v40
    %v60 = vcvt.s32.f32 %v41
    %v61 = vcvt.s32.f32 %v42
    %v62 = vcvt.s32.f32 %v43
    %v63 = vcvt.s32.f32 %v44
    %v64 = vcvt.s32.f32 %v45
    %v65 = vcvt.s32.f32 %v46
    %v66 = vcvt.s32.f32 %v47
    %v67 = vcvt.s32.f32 %v48
    %v68 = vcvt.s32.f32 %v49
    %v69 = vcvt.s32.f32 %v50
    %v70 = vcvt.s32.f32 %v51
    %v71 = vcvt.s32.f32 %v52
    %v72 = vcvt.s32.f32 %v53
    %v73 = vpack.c.bf16 %v58, %v57
    %v74 = vpack.c.bf16 %v60, %v59
    %v75 = vpack.c.bf16 %v62, %v61
    %v76 = vpack.c.bf16 %v64, %v63
    %v77 = vpack.c.bf16 %v66, %v65
    %v78 = vpack.c.bf16 %v68, %v67
    %v79 = vpack.c.bf16 %v70, %v69
    %v80 = vpack.c.bf16 %v72, %v71
    %v81 = vcvt.s32.f32 %v54
    %v82 = vcvt.s32.f32 %v55
    %v83 = vcvt.s32.f32 %v56
    %v84 = vpack.c.bf16 %v82, %v81
    %v85 = vpack.c.bf16 %v83, %v83
    %v87 = vpack.i.b16 %v84, %v84
    %v89 = vlaneseq
    %v90 = vshrl.u32 %v89, 7
    %v91 = vsub.s32 0, %v90
    %v92 = vrot.slane %v87, %v91
    %vm93 = vcmp.eq.bf16.partialorder %v73, %v92
    %vm94 = vcmp.eq.bf16.partialorder %v74, %v92
    %vm95 = vcmp.eq.bf16.partialorder %v75, %v92
    %vm96 = vcmp.eq.bf16.partialorder %v76, %v92
    %vm97 = vcmp.eq.bf16.partialorder %v77, %v92
    %vm98 = vcmp.eq.bf16.partialorder %v78, %v92
    %vm99 = vcmp.eq.bf16.partialorder %v79, %v92
    %vm100 = vcmp.eq.bf16.partialorder %v80, %v92
    %v101 = vshrl.u32 %v84, 16
    %v102 = vpack.i.b16 %v101, %v101
    %v104 = vlaneseq
    %v105 = vshrl.u32 %v104, 7
    %v106 = vsub.s32 0, %v105
    %v107 = vrot.slane %v102, %v106
    %vm108 = vcmp.eq.bf16.partialorder %v73, %v107
    %vm109 = vcmp.eq.bf16.partialorder %v74, %v107
    %vm110 = vcmp.eq.bf16.partialorder %v75, %v107
    %vm111 = vcmp.eq.bf16.partialorder %v76, %v107
    %vm112 = vcmp.eq.bf16.partialorder %v77, %v107
    %vm113 = vcmp.eq.bf16.partialorder %v78, %v107
    %vm114 = vcmp.eq.bf16.partialorder %v79, %v107
    %vm115 = vcmp.eq.bf16.partialorder %v80, %v107
    %vm116 = vmor %vm93, %vm108
    %vm117 = vmor %vm94, %vm109
    %vm118 = vmor %vm95, %vm110
    %vm119 = vmor %vm96, %vm111
    %vm120 = vmor %vm97, %vm112
    %vm121 = vmor %vm98, %vm113
    %vm122 = vmor %vm99, %vm114
    %vm123 = vmor %vm100, %vm115
    %v124 = vlaneseq
    %v125 = vshrl.u32 %v124, 7
    %v126 = vsub.s32 1, %v125
    %v127 = vrot.slane %v87, %v126
    %vm128 = vcmp.eq.bf16.partialorder %v73, %v127
    %vm129 = vcmp.eq.bf16.partialorder %v74, %v127
    %vm130 = vcmp.eq.bf16.partialorder %v75, %v127
    %vm131 = vcmp.eq.bf16.partialorder %v76, %v127
    %vm132 = vcmp.eq.bf16.partialorder %v77, %v127
    %vm133 = vcmp.eq.bf16.partialorder %v78, %v127
    %vm134 = vcmp.eq.bf16.partialorder %v79, %v127
    %vm135 = vcmp.eq.bf16.partialorder %v80, %v127
    %vm136 = vmor %vm116, %vm128
    %vm137 = vmor %vm117, %vm129
    %vm138 = vmor %vm118, %vm130
    %vm139 = vmor %vm119, %vm131
    %vm140 = vmor %vm120, %vm132
    %vm141 = vmor %vm121, %vm133
    %vm142 = vmor %vm122, %vm134
    %vm143 = vmor %vm123, %vm135
    %v144 = vlaneseq
    %v145 = vshrl.u32 %v144, 7
    %v146 = vsub.s32 1, %v145
    %v147 = vrot.slane %v102, %v146
    %vm148 = vcmp.eq.bf16.partialorder %v73, %v147
    %vm149 = vcmp.eq.bf16.partialorder %v74, %v147
    %vm150 = vcmp.eq.bf16.partialorder %v75, %v147
    %vm151 = vcmp.eq.bf16.partialorder %v76, %v147
    %vm152 = vcmp.eq.bf16.partialorder %v77, %v147
    %vm153 = vcmp.eq.bf16.partialorder %v78, %v147
    %vm154 = vcmp.eq.bf16.partialorder %v79, %v147
    %vm155 = vcmp.eq.bf16.partialorder %v80, %v147
    %vm156 = vmor %vm136, %vm148
    %vm157 = vmor %vm137, %vm149
    %vm158 = vmor %vm138, %vm150
    %vm159 = vmor %vm139, %vm151
    %vm160 = vmor %vm140, %vm152
    %vm161 = vmor %vm141, %vm153
    %vm162 = vmor %vm142, %vm154
    %vm163 = vmor %vm143, %vm155
    %v164 = vlaneseq
    %v165 = vshrl.u32 %v164, 7
    %v166 = vsub.s32 2, %v165
    %v167 = vrot.slane %v87, %v166
    %vm168 = vcmp.eq.bf16.partialorder %v73, %v167
    %vm169 = vcmp.eq.bf16.partialorder %v74, %v167
    %vm170 = vcmp.eq.bf16.partialorder %v75, %v167
    %vm171 = vcmp.eq.bf16.partialorder %v76, %v167
    %vm172 = vcmp.eq.bf16.partialorder %v77, %v167
    %vm173 = vcmp.eq.bf16.partialorder %v78, %v167
    %vm174 = vcmp.eq.bf16.partialorder %v79, %v167
    %vm175 = vcmp.eq.bf16.partialorder %v80, %v167
    %vm176 = vmor %vm156, %vm168
    %vm177 = vmor %vm157, %vm169
    %vm178 = vmor %vm158, %vm170
    %vm179 = vmor %vm159, %vm171
    %vm180 = vmor %vm160, %vm172
    %vm181 = vmor %vm161, %vm173
    %vm182 = vmor %vm162, %vm174
    %vm183 = vmor %vm163, %vm175
    %v184 = vlaneseq
    %v185 = vshrl.u32 %v184, 7
    %v186 = vsub.s32 2, %v185
    %v187 = vrot.slane %v102, %v186
    %vm188 = vcmp.eq.bf16.partialorder %v73, %v187
    %vm189 = vcmp.eq.bf16.partialorder %v74, %v187
    %vm190 = vcmp.eq.bf16.partialorder %v75, %v187
    %vm191 = vcmp.eq.bf16.partialorder %v76, %v187
    %vm192 = vcmp.eq.bf16.partialorder %v77, %v187
    %vm193 = vcmp.eq.bf16.partialorder %v78, %v187
    %vm194 = vcmp.eq.bf16.partialorder %v79, %v187
    %vm195 = vcmp.eq.bf16.partialorder %v80, %v187
    %vm196 = vmor %vm176, %vm188
    %vm197 = vmor %vm177, %vm189
    %vm198 = vmor %vm178, %vm190
    %vm199 = vmor %vm179, %vm191
    %vm200 = vmor %vm180, %vm192
    %vm201 = vmor %vm181, %vm193
    %vm202 = vmor %vm182, %vm194
    %vm203 = vmor %vm183, %vm195
    %v204 = vlaneseq
    %v205 = vshrl.u32 %v204, 7
    %v206 = vsub.s32 3, %v205
    %v207 = vrot.slane %v87, %v206
    %vm208 = vcmp.eq.bf16.partialorder %v73, %v207
    %vm209 = vcmp.eq.bf16.partialorder %v74, %v207
    %vm210 = vcmp.eq.bf16.partialorder %v75, %v207
    %vm211 = vcmp.eq.bf16.partialorder %v76, %v207
    %vm212 = vcmp.eq.bf16.partialorder %v77, %v207
    %vm213 = vcmp.eq.bf16.partialorder %v78, %v207
    %vm214 = vcmp.eq.bf16.partialorder %v79, %v207
    %vm215 = vcmp.eq.bf16.partialorder %v80, %v207
    %vm216 = vmor %vm196, %vm208
    %vm217 = vmor %vm197, %vm209
    %vm218 = vmor %vm198, %vm210
    %vm219 = vmor %vm199, %vm211
    %vm220 = vmor %vm200, %vm212
    %vm221 = vmor %vm201, %vm213
    %vm222 = vmor %vm202, %vm214
    %vm223 = vmor %vm203, %vm215
    %v224 = vlaneseq
    %v225 = vshrl.u32 %v224, 7
    %v226 = vsub.s32 3, %v225
    %v227 = vrot.slane %v102, %v226
    %vm228 = vcmp.eq.bf16.partialorder %v73, %v227
    %vm229 = vcmp.eq.bf16.partialorder %v74, %v227
    %vm230 = vcmp.eq.bf16.partialorder %v75, %v227
    %vm231 = vcmp.eq.bf16.partialorder %v76, %v227
    %vm232 = vcmp.eq.bf16.partialorder %v77, %v227
    %vm233 = vcmp.eq.bf16.partialorder %v78, %v227
    %vm234 = vcmp.eq.bf16.partialorder %v79, %v227
    %vm235 = vcmp.eq.bf16.partialorder %v80, %v227
    %vm236 = vmor %vm216, %vm228
    %vm237 = vmor %vm217, %vm229
    %vm238 = vmor %vm218, %vm230
    %vm239 = vmor %vm219, %vm231
    %vm240 = vmor %vm220, %vm232
    %vm241 = vmor %vm221, %vm233
    %vm242 = vmor %vm222, %vm234
    %vm243 = vmor %vm223, %vm235
    %v244 = vlaneseq
    %v245 = vshrl.u32 %v244, 7
    %v246 = vsub.s32 4, %v245
    %v247 = vrot.slane %v87, %v246
    %vm248 = vcmp.eq.bf16.partialorder %v73, %v247
    %vm249 = vcmp.eq.bf16.partialorder %v74, %v247
    %vm250 = vcmp.eq.bf16.partialorder %v75, %v247
    %vm251 = vcmp.eq.bf16.partialorder %v76, %v247
    %vm252 = vcmp.eq.bf16.partialorder %v77, %v247
    %vm253 = vcmp.eq.bf16.partialorder %v78, %v247
    %vm254 = vcmp.eq.bf16.partialorder %v79, %v247
    %vm255 = vcmp.eq.bf16.partialorder %v80, %v247
    %vm256 = vmor %vm236, %vm248
    %vm257 = vmor %vm237, %vm249
    %vm258 = vmor %vm238, %vm250
    %vm259 = vmor %vm239, %vm251
    %vm260 = vmor %vm240, %vm252
    %vm261 = vmor %vm241, %vm253
    %vm262 = vmor %vm242, %vm254
    %vm263 = vmor %vm243, %vm255
    %v264 = vlaneseq
    %v265 = vshrl.u32 %v264, 7
    %v266 = vsub.s32 4, %v265
    %v267 = vrot.slane %v102, %v266
    %vm268 = vcmp.eq.bf16.partialorder %v73, %v267
    %vm269 = vcmp.eq.bf16.partialorder %v74, %v267
    %vm270 = vcmp.eq.bf16.partialorder %v75, %v267
    %vm271 = vcmp.eq.bf16.partialorder %v76, %v267
    %vm272 = vcmp.eq.bf16.partialorder %v77, %v267
    %vm273 = vcmp.eq.bf16.partialorder %v78, %v267
    %vm274 = vcmp.eq.bf16.partialorder %v79, %v267
    %vm275 = vcmp.eq.bf16.partialorder %v80, %v267
    %vm276 = vmor %vm256, %vm268
    %vm277 = vmor %vm257, %vm269
    %vm278 = vmor %vm258, %vm270
    %vm279 = vmor %vm259, %vm271
    %vm280 = vmor %vm260, %vm272
    %vm281 = vmor %vm261, %vm273
    %vm282 = vmor %vm262, %vm274
    %vm283 = vmor %vm263, %vm275
    %v284 = vlaneseq
    %v285 = vshrl.u32 %v284, 7
    %v286 = vsub.s32 5, %v285
    %v287 = vrot.slane %v87, %v286
    %vm288 = vcmp.eq.bf16.partialorder %v73, %v287
    %vm289 = vcmp.eq.bf16.partialorder %v74, %v287
    %vm290 = vcmp.eq.bf16.partialorder %v75, %v287
    %vm291 = vcmp.eq.bf16.partialorder %v76, %v287
    %vm292 = vcmp.eq.bf16.partialorder %v77, %v287
    %vm293 = vcmp.eq.bf16.partialorder %v78, %v287
    %vm294 = vcmp.eq.bf16.partialorder %v79, %v287
    %vm295 = vcmp.eq.bf16.partialorder %v80, %v287
    %vm296 = vmor %vm276, %vm288
    %vm297 = vmor %vm277, %vm289
    %vm298 = vmor %vm278, %vm290
    %vm299 = vmor %vm279, %vm291
    %vm300 = vmor %vm280, %vm292
    %vm301 = vmor %vm281, %vm293
    %vm302 = vmor %vm282, %vm294
    %vm303 = vmor %vm283, %vm295
    %v304 = vlaneseq
    %v305 = vshrl.u32 %v304, 7
    %v306 = vsub.s32 5, %v305
    %v307 = vrot.slane %v102, %v306
    %vm308 = vcmp.eq.bf16.partialorder %v73, %v307
    %vm309 = vcmp.eq.bf16.partialorder %v74, %v307
    %vm310 = vcmp.eq.bf16.partialorder %v75, %v307
    %vm311 = vcmp.eq.bf16.partialorder %v76, %v307
    %vm312 = vcmp.eq.bf16.partialorder %v77, %v307
    %vm313 = vcmp.eq.bf16.partialorder %v78, %v307
    %vm314 = vcmp.eq.bf16.partialorder %v79, %v307
    %vm315 = vcmp.eq.bf16.partialorder %v80, %v307
    %vm316 = vmor %vm296, %vm308
    %vm317 = vmor %vm297, %vm309
    %vm318 = vmor %vm298, %vm310
    %vm319 = vmor %vm299, %vm311
    %vm320 = vmor %vm300, %vm312
    %vm321 = vmor %vm301, %vm313
    %vm322 = vmor %vm302, %vm314
    %vm323 = vmor %vm303, %vm315
    %v324 = vlaneseq
    %v325 = vshrl.u32 %v324, 7
    %v326 = vsub.s32 6, %v325
    %v327 = vrot.slane %v87, %v326
    %vm328 = vcmp.eq.bf16.partialorder %v73, %v327
    %vm329 = vcmp.eq.bf16.partialorder %v74, %v327
    %vm330 = vcmp.eq.bf16.partialorder %v75, %v327
    %vm331 = vcmp.eq.bf16.partialorder %v76, %v327
    %vm332 = vcmp.eq.bf16.partialorder %v77, %v327
    %vm333 = vcmp.eq.bf16.partialorder %v78, %v327
    %vm334 = vcmp.eq.bf16.partialorder %v79, %v327
    %vm335 = vcmp.eq.bf16.partialorder %v80, %v327
    %vm336 = vmor %vm316, %vm328
    %vm337 = vmor %vm317, %vm329
    %vm338 = vmor %vm318, %vm330
    %vm339 = vmor %vm319, %vm331
    %vm340 = vmor %vm320, %vm332
    %vm341 = vmor %vm321, %vm333
    %vm342 = vmor %vm322, %vm334
    %vm343 = vmor %vm323, %vm335
    %v344 = vlaneseq
    %v345 = vshrl.u32 %v344, 7
    %v346 = vsub.s32 6, %v345
    %v347 = vrot.slane %v102, %v346
    %vm348 = vcmp.eq.bf16.partialorder %v73, %v347
    %vm349 = vcmp.eq.bf16.partialorder %v74, %v347
    %vm350 = vcmp.eq.bf16.partialorder %v75, %v347
    %vm351 = vcmp.eq.bf16.partialorder %v76, %v347
    %vm352 = vcmp.eq.bf16.partialorder %v77, %v347
    %vm353 = vcmp.eq.bf16.partialorder %v78, %v347
    %vm354 = vcmp.eq.bf16.partialorder %v79, %v347
    %vm355 = vcmp.eq.bf16.partialorder %v80, %v347
    %vm356 = vmor %vm336, %vm348
    %vm357 = vmor %vm337, %vm349
    %vm358 = vmor %vm338, %vm350
    %vm359 = vmor %vm339, %vm351
    %vm360 = vmor %vm340, %vm352
    %vm361 = vmor %vm341, %vm353
    %vm362 = vmor %vm342, %vm354
    %vm363 = vmor %vm343, %vm355
    %v364 = vsel %vm356, 1065369472, 0
    %v365 = vsel %vm357, 1065369472, 0
    %v366 = vsel %vm358, 1065369472, 0
    %v367 = vsel %vm359, 1065369472, 0
    %v368 = vsel %vm360, 1065369472, 0
    %v369 = vsel %vm361, 1065369472, 0
    %v370 = vsel %vm362, 1065369472, 0
    %v371 = vsel %vm363, 1065369472, 0
    %v372 = vlaneseq
    %v373 = vshrl.u32 %v372, 7
    %v374 = vsub.s32 7, %v373
    %v375 = vrot.slane %v87, %v374
    %vm376 = vcmp.eq.bf16.partialorder %v73, %v375
    %vm377 = vcmp.eq.bf16.partialorder %v74, %v375
    %vm378 = vcmp.eq.bf16.partialorder %v75, %v375
    %vm379 = vcmp.eq.bf16.partialorder %v76, %v375
    %vm380 = vcmp.eq.bf16.partialorder %v77, %v375
    %vm381 = vcmp.eq.bf16.partialorder %v78, %v375
    %vm382 = vcmp.eq.bf16.partialorder %v79, %v375
    %vm383 = vcmp.eq.bf16.partialorder %v80, %v375
    %v384 = vlaneseq
    %v385 = vshrl.u32 %v384, 7
    %v386 = vsub.s32 7, %v385
    %v387 = vrot.slane %v102, %v386
    %vm388 = vcmp.eq.bf16.partialorder %v73, %v387
    %vm389 = vcmp.eq.bf16.partialorder %v74, %v387
    %vm390 = vcmp.eq.bf16.partialorder %v75, %v387
    %vm391 = vcmp.eq.bf16.partialorder %v76, %v387
    %vm392 = vcmp.eq.bf16.partialorder %v77, %v387
    %vm393 = vcmp.eq.bf16.partialorder %v78, %v387
    %vm394 = vcmp.eq.bf16.partialorder %v79, %v387
    %vm395 = vcmp.eq.bf16.partialorder %v80, %v387
    %vm396 = vmor %vm376, %vm388
    %vm397 = vmor %vm377, %vm389
    %vm398 = vmor %vm378, %vm390
    %vm399 = vmor %vm379, %vm391
    %vm400 = vmor %vm380, %vm392
    %vm401 = vmor %vm381, %vm393
    %vm402 = vmor %vm382, %vm394
    %vm403 = vmor %vm383, %vm395
    %v405 = vpack.i.b16 %v85, %v85
    %v407 = vlaneseq
    %v408 = vshrl.u32 %v407, 7
    %v409 = vsub.s32 0, %v408
    %v410 = vrot.slane %v405, %v409
    %vm411 = vcmp.eq.bf16.partialorder %v73, %v410
    %vm412 = vcmp.eq.bf16.partialorder %v74, %v410
    %vm413 = vcmp.eq.bf16.partialorder %v75, %v410
    %vm414 = vcmp.eq.bf16.partialorder %v76, %v410
    %vm415 = vcmp.eq.bf16.partialorder %v77, %v410
    %vm416 = vcmp.eq.bf16.partialorder %v78, %v410
    %vm417 = vcmp.eq.bf16.partialorder %v79, %v410
    %vm418 = vcmp.eq.bf16.partialorder %v80, %v410
    %vm419 = vmor %vm396, %vm411
    %vm420 = vmor %vm397, %vm412
    %vm421 = vmor %vm398, %vm413
    %vm422 = vmor %vm399, %vm414
    %vm423 = vmor %vm400, %vm415
    %vm424 = vmor %vm401, %vm416
    %vm425 = vmor %vm402, %vm417
    %vm426 = vmor %vm403, %vm418
    %v427 = vshrl.u32 %v85, 16
    %v428 = vpack.i.b16 %v427, %v427
    %v430 = vlaneseq
    %v431 = vshrl.u32 %v430, 7
    %v432 = vsub.s32 0, %v431
    %v433 = vrot.slane %v428, %v432
    %vm434 = vcmp.eq.bf16.partialorder %v73, %v433
    %vm435 = vcmp.eq.bf16.partialorder %v74, %v433
    %vm436 = vcmp.eq.bf16.partialorder %v75, %v433
    %vm437 = vcmp.eq.bf16.partialorder %v76, %v433
    %vm438 = vcmp.eq.bf16.partialorder %v77, %v433
    %vm439 = vcmp.eq.bf16.partialorder %v78, %v433
    %vm440 = vcmp.eq.bf16.partialorder %v79, %v433
    %vm441 = vcmp.eq.bf16.partialorder %v80, %v433
    %vm442 = vmor %vm419, %vm434
    %vm443 = vmor %vm420, %vm435
    %vm444 = vmor %vm421, %vm436
    %vm445 = vmor %vm422, %vm437
    %vm446 = vmor %vm423, %vm438
    %vm447 = vmor %vm424, %vm439
    %vm448 = vmor %vm425, %vm440
    %vm449 = vmor %vm426, %vm441
    %v450 = vlaneseq
    %v451 = vshrl.u32 %v450, 7
    %v452 = vsub.s32 1, %v451
    %v453 = vrot.slane %v405, %v452
    %vm454 = vcmp.eq.bf16.partialorder %v73, %v453
    %vm455 = vcmp.eq.bf16.partialorder %v74, %v453
    %vm456 = vcmp.eq.bf16.partialorder %v75, %v453
    %vm457 = vcmp.eq.bf16.partialorder %v76, %v453
    %vm458 = vcmp.eq.bf16.partialorder %v77, %v453
    %vm459 = vcmp.eq.bf16.partialorder %v78, %v453
    %vm460 = vcmp.eq.bf16.partialorder %v79, %v453
    %vm461 = vcmp.eq.bf16.partialorder %v80, %v453
    %vm462 = vmor %vm442, %vm454
    %vm463 = vmor %vm443, %vm455
    %vm464 = vmor %vm444, %vm456
    %vm465 = vmor %vm445, %vm457
    %vm466 = vmor %vm446, %vm458
    %vm467 = vmor %vm447, %vm459
    %vm468 = vmor %vm448, %vm460
    %vm469 = vmor %vm449, %vm461
    %v470 = vsel %vm462, 1065369472, 0
    %v471 = vsel %vm463, 1065369472, 0
    %v472 = vsel %vm464, 1065369472, 0
    %v473 = vsel %vm465, 1065369472, 0
    %v474 = vsel %vm466, 1065369472, 0
    %v475 = vsel %vm467, 1065369472, 0
    %v476 = vsel %vm468, 1065369472, 0
    %v477 = vsel %vm469, 1065369472, 0
    %v478 = vld [vmem:[%s1] sm:$0xf]
    %v479 = vld [vmem:[%s1 + $0x8] sm:$0xf]
    %v480 = vld [vmem:[%s1 + $0x10] sm:$0xf]
    %v481 = vld [vmem:[%s1 + $0x18] sm:$0xf]
    %v482 = vld [vmem:[%s1 + $0x4] sm:$0xf]
    %v483 = vld [vmem:[%s1 + $0xc] sm:$0xf]
    %v484 = vld [vmem:[%s1 + $0x14] sm:$0xf]
    %v485 = vld [vmem:[%s1 + $0x1c] sm:$0xf]
    %v490 = vunpack.c.l.b16 %v482
    %v491 = vunpack.c.l.b16 %v483
    %v492 = vunpack.c.l.b16 %v484
    %v493 = vunpack.c.l.b16 %v485
    %v494 = vpack.c.b16 %v491, %v490
    %v495 = vpack.c.b16 %v493, %v492
    %498 = vmatprep.subr.bf16.mxu0 0
    %499 = vmatpush1.bf16.msra.mxu0 %v477
    %500 = vmatprep.subr.bf16.mxu0 0
    %501 = vmatpush1.bf16.msra.mxu0 %v476
    %502 = vmatprep.subr.bf16.mxu0 0
    %503 = vmatpush1.bf16.msra.mxu0 %v475
    %504 = vmatprep.subr.bf16.mxu0 0
    %505 = vmatpush1.bf16.msra.mxu0 %v474
    %506 = vmatprep.subr.bf16.mxu0 0
    %507 = vmatpush1.bf16.msra.mxu0 %v473
    %508 = vmatprep.subr.bf16.mxu0 0
    %509 = vmatpush1.bf16.msra.mxu0 %v472
    %510 = vmatprep.subr.bf16.mxu0 0
    %511 = vmatpush1.bf16.msra.mxu0 %v471
    %512 = vmatprep.subr.bf16.mxu0 0
    %513 = vmatpush1.bf16.msra.mxu0 %v470
    %514 = vmatprep.subr.bf16.mxu0 0
    %515 = vmatpush2.bf16.msra.mxu0 0
    %516 = vmatprep.subr.bf16.mxu0 0
    %517 = vmatpush2.bf16.msra.mxu0 0
    %518 = vmatprep.subr.bf16.mxu0 0
    %519 = vmatpush2.bf16.msra.mxu0 0
    %520 = vmatprep.subr.bf16.mxu0 0
    %521 = vmatpush2.bf16.msra.mxu0 0
    %522 = vmatprep.subr.bf16.mxu0 0
    %523 = vmatpush2.bf16.msra.mxu0 0
    %524 = vmatprep.subr.bf16.mxu0 0
    %525 = vmatpush2.bf16.msra.mxu0 0
    %526 = vmatprep.subr.bf16.mxu0 0
    %527 = vmatpush2.bf16.msra.mxu0 0
    %528 = vmatprep.subr.bf16.mxu0 0
    %529 = vmatpush2.bf16.msra.mxu0 0
    %530 = vmatprep.mubr.bf16.mxu0 0
    %531 = vmatmul.mubr.bf16.gmra.mxu0 %v494
    %v532 = vpop.f32.mrf.mxu0
    %v533 = vadd.f32 0.0, %v532
    %v534 = vpop.f32.mrf.mxu0
    %v535 = vpop.f32.mrf.mxu0
    %v536 = vadd.f32 0.0, %v535
    %v537 = vpop.f32.mrf.mxu0
    %538 = vmatprep.mubr.bf16.mxu0 0
    %539 = vmatmul.mubr.bf16.gmra.mxu0 %v495
    %v540 = vpop.f32.mrf.mxu0
    %v541 = vadd.f32 0.0, %v540
    %v542 = vpop.f32.mrf.mxu0
    %v543 = vpop.f32.mrf.mxu0
    %v544 = vadd.f32 0.0, %v543
    %v545 = vpop.f32.mrf.mxu0
    %546 = vdwg.mxu0
    %v551 = vunpack.c.l.b16 %v478
    %v552 = vunpack.c.l.b16 %v479
    %v553 = vunpack.c.l.b16 %v480
    %v554 = vunpack.c.l.b16 %v481
    %v555 = vpack.c.b16 %v552, %v551
    %v556 = vpack.c.b16 %v554, %v553
    %559 = vmatprep.subr.bf16.mxu0 0
    %560 = vmatpush1.bf16.msra.mxu0 %v371
    %561 = vmatprep.subr.bf16.mxu0 0
    %562 = vmatpush1.bf16.msra.mxu0 %v370
    %563 = vmatprep.subr.bf16.mxu0 0
    %564 = vmatpush1.bf16.msra.mxu0 %v369
    %565 = vmatprep.subr.bf16.mxu0 0
    %566 = vmatpush1.bf16.msra.mxu0 %v368
    %567 = vmatprep.subr.bf16.mxu0 0
    %568 = vmatpush1.bf16.msra.mxu0 %v367
    %569 = vmatprep.subr.bf16.mxu0 0
    %570 = vmatpush1.bf16.msra.mxu0 %v366
    %571 = vmatprep.subr.bf16.mxu0 0
    %572 = vmatpush1.bf16.msra.mxu0 %v365
    %573 = vmatprep.subr.bf16.mxu0 0
    %574 = vmatpush1.bf16.msra.mxu0 %v364
    %575 = vmatprep.subr.bf16.mxu0 0
    %576 = vmatpush2.bf16.msra.mxu0 0
    %577 = vmatprep.subr.bf16.mxu0 0
    %578 = vmatpush2.bf16.msra.mxu0 0
    %579 = vmatprep.subr.bf16.mxu0 0
    %580 = vmatpush2.bf16.msra.mxu0 0
    %581 = vmatprep.subr.bf16.mxu0 0
    %582 = vmatpush2.bf16.msra.mxu0 0
    %583 = vmatprep.subr.bf16.mxu0 0
    %584 = vmatpush2.bf16.msra.mxu0 0
    %585 = vmatprep.subr.bf16.mxu0 0
    %586 = vmatpush2.bf16.msra.mxu0 0
    %587 = vmatprep.subr.bf16.mxu0 0
    %588 = vmatpush2.bf16.msra.mxu0 0
    %589 = vmatprep.subr.bf16.mxu0 0
    %590 = vmatpush2.bf16.msra.mxu0 0
    %591 = vmatprep.mubr.bf16.mxu0 0
    %592 = vmatmul.mubr.bf16.gmra.mxu0 %v555
    %v593 = vpop.f32.mrf.mxu0
    %v594 = vadd.f32 %v533, %v593
    %v595 = vpop.f32.mrf.mxu0
    %v596 = vpop.f32.mrf.mxu0
    %v597 = vadd.f32 %v536, %v596
    %v598 = vpop.f32.mrf.mxu0
    %599 = vmatprep.mubr.bf16.mxu0 0
    %600 = vmatmul.mubr.bf16.gmra.mxu0 %v556
    %v601 = vpop.f32.mrf.mxu0
    %v602 = vadd.f32 %v541, %v601
    %v603 = vpop.f32.mrf.mxu0
    %v604 = vpop.f32.mrf.mxu0
    %v605 = vadd.f32 %v544, %v604
    %v606 = vpop.f32.mrf.mxu0
    %607 = vdwg.mxu0
    %v608 = vld [vmem:[%s2] sm:$0xff]
    %v609 = vld [vmem:[%s2 + $0x8] sm:$0xff]
    %v610 = vld [vmem:[%s2 + $0x10] sm:$0xff]
    %v611 = vld [vmem:[%s2 + $0x18] sm:$0xff]
    %613 = vset.pattern.permute.xlu0 0
    %614 = vperm.xlu0 %613, %v608
    %v615 = vpop.permute.xlu0 %614
    %618 = vset.pattern.permute.xlu0 0
    %619 = vperm.xlu0 %618, %v609
    %v620 = vpop.permute.xlu0 %619
    %623 = vset.pattern.permute.xlu0 0
    %624 = vperm.xlu0 %623, %v610
    %v625 = vpop.permute.xlu0 %624
    %628 = vset.pattern.permute.xlu0 0
    %629 = vperm.xlu0 %628, %v611
    %v630 = vpop.permute.xlu0 %629
    %v632 = vadd.f32 %v594, %v615
    %v633 = vadd.f32 %v597, %v620
    %v634 = vadd.f32 %v602, %v625
    %v635 = vadd.f32 %v605, %v630
    %v636 = vmax.f32 %v632, 0.0
    %v637 = vmax.f32 %v633, 0.0
    %v638 = vmax.f32 %v634, 0.0
    %v639 = vmax.f32 %v635, 0.0
    %v640 = vpack.c.bf16 %v637, %v636
    %v641 = vpack.c.bf16 %v639, %v638
    %v642 = vld [vmem:[#allocation2] sm:$0xf]
    %v643 = vld [vmem:[#allocation2 + $0x4] sm:$0xf]
    %v644 = vld [vmem:[#allocation2 + $0x8] sm:$0xf]
    %v645 = vld [vmem:[#allocation2 + $0xc] sm:$0xf]
    %v646 = vld [vmem:[%s4] sm:$0xff]
    %v647 = vld [vmem:[%s4 + $0x8] sm:$0xff]
    %v648 = vld [vmem:[%s4 + $0x10] sm:$0xff]
    %v649 = vld [vmem:[%s4 + $0x18] sm:$0xff]
    %651 = vset.pattern.permute.xlu0 0
    %652 = vperm.xlu0 %651, %v646
    %v653 = vpop.permute.xlu0 %652
    %656 = vset.pattern.permute.xlu0 0
    %657 = vperm.xlu0 %656, %v647
    %v658 = vpop.permute.xlu0 %657
    %661 = vset.pattern.permute.xlu0 0
    %662 = vperm.xlu0 %661, %v648
    %v663 = vpop.permute.xlu0 %662
    %666 = vset.pattern.permute.xlu0 0
    %667 = vperm.xlu0 %666, %v649
    %v668 = vpop.permute.xlu0 %667
    %v674 = vunpack.c.l.b16 %v642
    %v675 = vunpack.c.l.b16 %v643
    %v676 = vunpack.c.l.b16 %v644
    %v677 = vunpack.c.l.b16 %v645
    %v678 = vpack.c.b16 %v675, %v674
    %v679 = vpack.c.b16 %v677, %v676
    %vm680 = vcmask 261120
    %v682 = vsel %vm680, %v678, 0
    %v685 = vsel %vm680, %v679, 0
    %687 = vmatprep.subr.bf16.mxu0 0
    %688 = vmatpush1.bf16.msra.mxu0 0
    %689 = vmatprep.subr.bf16.mxu0 0
    %690 = vmatpush1.bf16.msra.mxu0 0
    %691 = vmatprep.subr.bf16.mxu0 0
    %692 = vmatpush1.bf16.msra.mxu0 0
    %693 = vmatprep.subr.bf16.mxu0 0
    %694 = vmatpush1.bf16.msra.mxu0 0
    %695 = vmatprep.subr.bf16.mxu0 0
    %696 = vmatpush1.bf16.msra.mxu0 0
    %697 = vmatprep.subr.bf16.mxu0 0
    %698 = vmatpush1.bf16.msra.mxu0 0
    %699 = vmatprep.subr.bf16.mxu0 0
    %700 = vmatpush1.bf16.msra.mxu0 %v641
    %701 = vmatprep.subr.bf16.mxu0 0
    %702 = vmatpush1.bf16.msra.mxu0 %v640
    %703 = vmatprep.subr.bf16.mxu0 0
    %704 = vmatpush2.bf16.msra.mxu0 0
    %705 = vmatprep.subr.bf16.mxu0 0
    %706 = vmatpush2.bf16.msra.mxu0 0
    %707 = vmatprep.subr.bf16.mxu0 0
    %708 = vmatpush2.bf16.msra.mxu0 0
    %709 = vmatprep.subr.bf16.mxu0 0
    %710 = vmatpush2.bf16.msra.mxu0 0
    %711 = vmatprep.subr.bf16.mxu0 0
    %712 = vmatpush2.bf16.msra.mxu0 0
    %713 = vmatprep.subr.bf16.mxu0 0
    %714 = vmatpush2.bf16.msra.mxu0 0
    %715 = vmatprep.subr.bf16.mxu0 0
    %716 = vmatpush2.bf16.msra.mxu0 0
    %717 = vmatprep.subr.bf16.mxu0 0
    %718 = vmatpush2.bf16.msra.mxu0 0
    %719 = vmatprep.mubr.bf16.mxu0 0
    %720 = vmatmul.mubr.bf16.gmra.mxu0 %v682
    %v721 = vpop.f32.mrf.mxu0
    %v722 = vadd.f32 %v653, %v721
    %v723 = vpop.f32.mrf.mxu0
    %v724 = vpop.f32.mrf.mxu0
    %v725 = vadd.f32 %v658, %v724
    %v726 = vpop.f32.mrf.mxu0
    %727 = vmatprep.mubr.bf16.mxu0 0
    %728 = vmatmul.mubr.bf16.gmra.mxu0 %v685
    %v729 = vpop.f32.mrf.mxu0
    %v730 = vadd.f32 %v663, %v729
    %v731 = vpop.f32.mrf.mxu0
    %v732 = vpop.f32.mrf.mxu0
    %v733 = vadd.f32 %v668, %v732
    %v734 = vpop.f32.mrf.mxu0
    %735 = vdwg.mxu0
    %736 = vst [vmem:[#allocation5] sm:$0xff] %v722
    %737 = vst [vmem:[#allocation5 + $0x8] sm:$0xff] %v725
    %738 = vst [vmem:[#allocation5 + $0x10] sm:$0xff] %v730
    %739 = vst [vmem:[#allocation5 + $0x18] sm:$0xff] %v733
    // Predicated region
    $region26: #{tpu_custom_call.1} parent=1 // pred_check
      _
    $region27: #{tpu_custom_call.1} parent=1 // pred_check_branch
      %741 = sbr.rel (0) target = $region29
    $region28: #{tpu_custom_call.1} parent=1 // pred_region
      %s743 = ssub.s32 512, 512
      %744 = vsyncadd [#allocation4], %s743
      %s745 = sshll.u32 [#allocation5], 4
      %s746 = int_to_ptr.vmem [resolvable:$true] %s745
      %751 = dma.vmem_to_hbm [thread:$0]  %s746, 512, %s5, [#allocation4], 128, 128, 8
    $region29: #{tpu_custom_call.1} parent=1 // pred_fallthru
      _
    // Predicated region
    $region30: #{tpu_custom_call.1} parent=1 // pred_check
      _
    $region31: #{tpu_custom_call.1} parent=1 // pred_check_branch
      %753 = sbr.rel (0) target = $region33
    $region32: #{tpu_custom_call.1} parent=1 // pred_region
      %754 = dma.done [#allocation4], 512
    $region33: #{tpu_custom_call.1} parent=1 // pred_fallthru
      _
    %755 = vsyncpa [#allocation3], 1
    %756 = vsyncpa [#allocation4], 1

</llo_original>
